<compile_context>
chip_gen: v7x
topology: tpu7x:2x2x1
jax: 0.10.0
libtpu: 0.0.40
codegen_flags: <defaults>
</compile_context>

<pallas_src>
import jax
import jax.numpy as jnp
from jax.experimental import pallas as pl
from jax.experimental.pallas import tpu as pltpu

_SUBLANE = 8        # f32 sublane height; batch tile is a multiple of this
_MAX_TB = 8192      # cap on batch tile (few MiB of VMEM with unpadded features)
_TARGET_STEPS = 16  # aim for a moderate number of grid steps on large batches


def _round_up(n, m):
    return ((n + m - 1) // m) * m


def _policy_kernel(x_ref, w1_ref, b1_ref, w2_ref, b2_ref, w3_ref, b3_ref, o_ref):
    # Activations arrive as f32 (tb, state_dim); cast to bf16 in-kernel for the MXU.
    x = x_ref[...].astype(jnp.bfloat16)

    # Layer 1: Linear(state_dim, 64) + ReLU   (bf16 MXU, f32 accumulate)
    h1 = jnp.dot(x, w1_ref[...], preferred_element_type=jnp.float32) + b1_ref[...]
    h1 = jnp.maximum(h1, 0.0).astype(jnp.bfloat16)

    # Layer 2: Linear(64, 64) + ReLU
    h2 = jnp.dot(h1, w2_ref[...], preferred_element_type=jnp.float32) + b2_ref[...]
    h2 = jnp.maximum(h2, 0.0).astype(jnp.bfloat16)

    # Layer 3: Linear(64, action_dim) -> logits (f32, matches PyTorch .float())
    logits = jnp.dot(h2, w3_ref[...], preferred_element_type=jnp.float32) + b3_ref[...]
    o_ref[...] = logits  # (tb, action_dim) f32 store; action_dim is the full dim


def pack_params(params):
    """One-time cast of weights to bf16 (MXU operands) and biases to f32 (1, n).

    Hoist this out of the per-call path in a rollout/training loop."""
    w1, b1, w2, b2, w3, b3 = params
    as_bias = lambda b: b.reshape(1, -1).astype(jnp.float32)
    return (w1.astype(jnp.bfloat16), as_bias(b1),
            w2.astype(jnp.bfloat16), as_bias(b2),
            w3.astype(jnp.bfloat16), as_bias(b3))


def discrete_policy_forward(states, packed_params):
    """states: (B, state_dim) float32 -> logits: (B, action_dim) float32."""
    w1, b1, w2, b2, w3, b3 = packed_params
    B, state_dim = states.shape
    hidden = w1.shape[1]
    action_dim = w3.shape[1]

    # Batch tile tied to B: target ~_TARGET_STEPS grid steps, clamp to [8, 8192],
    # keep it a multiple of the sublane height.
    tb = _round_up(pl.cdiv(B, _TARGET_STEPS), _SUBLANE)
    tb = max(_SUBLANE, min(_MAX_TB, tb))
    bp = _round_up(B, tb)

    # Pad the batch (only) when needed; zero rows are inert through the MLP.
    x = states.astype(jnp.float32)
    if bp != B:
        x = jnp.pad(x, ((0, bp - B), (0, 0)))

    # Weights/biases use their true (full-array) shapes and stay resident in VMEM.
    resident = lambda arr: pl.BlockSpec(arr.shape, lambda i: (0,) * arr.ndim)

    out = pl.pallas_call(
        _policy_kernel,
        out_shape=jax.ShapeDtypeStruct((bp, action_dim), jnp.float32),
        grid=(bp // tb,),
        in_specs=[
            pl.BlockSpec((tb, state_dim), lambda i: (i, 0)),  # activations, batch-tiled
            resident(w1), resident(b1),
            resident(w2), resident(b2),
            resident(w3), resident(b3),
        ],
        out_specs=pl.BlockSpec((tb, action_dim), lambda i: (i, 0)),
        compiler_params=pltpu.CompilerParams(
            # Batch axis is independent -> shard grid steps across v7x's 2 TCs.
            dimension_semantics=("parallel",),
            # Per-step footprint is small (unpadded features); no vmem override needed.
        ),
    )(x, w1, b1, w2, b2, w3, b3)

    return out[:B] if bp != B else out


def init_params(key, state_dim, action_dim, hidden=64):
    """Deterministic synthetic init (PyTorch-style uniform fan-in bound)."""
    ks = jax.random.split(key, 6)

    def linear(kw, kb, fan_in, fan_out):
        bound = 1.0 / jnp.sqrt(jnp.float32(fan_in))
        w = jax.random.uniform(kw, (fan_in, fan_out), jnp.float32, -bound, bound)
        b = jax.random.uniform(kb, (fan_out,), jnp.float32, -bound, bound)
        return w, b

    w1, b1 = linear(ks[0], ks[1], state_dim, hidden)
    w2, b2 = linear(ks[2], ks[3], hidden, hidden)
    w3, b3 = linear(ks[4], ks[5], hidden, action_dim)
    return (w1, b1, w2, b2, w3, b3)


def reference_forward(states, params):
    w1, b1, w2, b2, w3, b3 = params
    h1 = jnp.maximum(states @ w1 + b1, 0.0)
    h2 = jnp.maximum(h1 @ w2 + b2, 0.0)
    return (h2 @ w3 + b3).astype(jnp.float32)


if __name__ == "__main__":
    key = jax.random.PRNGKey(0)
    k_x, k_p = jax.random.split(key)

    B, state_dim, action_dim = 2, 8, 4
    states = jax.random.normal(k_x, (B, state_dim), jnp.float32)
    params = init_params(k_p, state_dim, action_dim)
    packed = pack_params(params)

    logits = discrete_policy_forward(states, packed)
    jax.block_until_ready(logits)

    ref = reference_forward(states, params)
    assert logits.shape == (B, action_dim)
    assert logits.dtype == jnp.float32
    # bf16 MXU operands with f32 accumulation -> loosened tolerance vs f32 ref.
    assert jnp.allclose(logits, ref, atol=2e-2, rtol=2e-2)

    print("KERNEL_OK")
</pallas_src>

<mosaic_0001>
module attributes {stable_mosaic.version = 11 : i64} {
  func.func @_policy_kernel(%arg0: i32, %arg1: memref<8x8xf32, #tpu.memory_space<vmem>>, %arg2: memref<8x64xbf16, #tpu.memory_space<vmem>>, %arg3: memref<1x64xf32, #tpu.memory_space<vmem>>, %arg4: memref<64x64xbf16, #tpu.memory_space<vmem>>, %arg5: memref<1x64xf32, #tpu.memory_space<vmem>>, %arg6: memref<64x4xbf16, #tpu.memory_space<vmem>>, %arg7: memref<1x4xf32, #tpu.memory_space<vmem>>, %arg8: memref<8x4xf32, #tpu.memory_space<vmem>>) attributes {dimension_semantics = [#tpu.dimension_semantics<parallel>], iteration_bounds = array<i64: 1>, scalar_prefetch = 0 : i64, scratch_operands = 0 : i64, tpu.core_type = #tpu.core_type<tc>, window_params = [{transform_indices = @transform_0, window_bounds = array<i64: 8, 8>}, {pipeline_mode = #tpu.pipeline_mode<synchronous>, transform_indices = @transform_1, window_bounds = array<i64: 8, 64>}, {pipeline_mode = #tpu.pipeline_mode<synchronous>, transform_indices = @transform_2, window_bounds = array<i64: 1, 64>}, {pipeline_mode = #tpu.pipeline_mode<synchronous>, transform_indices = @transform_3, window_bounds = array<i64: 64, 64>}, {pipeline_mode = #tpu.pipeline_mode<synchronous>, transform_indices = @transform_4, window_bounds = array<i64: 1, 64>}, {pipeline_mode = #tpu.pipeline_mode<synchronous>, transform_indices = @transform_5, window_bounds = array<i64: 64, 4>}, {pipeline_mode = #tpu.pipeline_mode<synchronous>, transform_indices = @transform_6, window_bounds = array<i64: 1, 4>}, {transform_indices = @transform_7, window_bounds = array<i64: 8, 4>}]} {
    %c0 = arith.constant 0 : index
    %c0_0 = arith.constant 0 : index
    %0 = vector.load %arg1[%c0, %c0_0] : memref<8x8xf32, #tpu.memory_space<vmem>>, vector<8x8xf32>
    %1 = arith.truncf %0 : vector<8x8xf32> to vector<8x8xbf16>
    %c0_1 = arith.constant 0 : index
    %c0_2 = arith.constant 0 : index
    %2 = vector.load %arg2[%c0_1, %c0_2] : memref<8x64xbf16, #tpu.memory_space<vmem>>, vector<8x64xbf16>
    %cst = arith.constant dense<0.000000e+00> : vector<8x64xf32>
    %3 = tpu.matmul %1, %2, %cst {dimension_numbers = #tpu.dot_dimension_numbers<[1], [0], [0], [1], [0, 0, 1, 1], [], []>} : vector<8x8xbf16>, vector<8x64xbf16>, vector<8x64xf32> -> vector<8x64xf32>
    %c0_3 = arith.constant 0 : index
    %c0_4 = arith.constant 0 : index
    %4 = vector.load %arg3[%c0_3, %c0_4] : memref<1x64xf32, #tpu.memory_space<vmem>>, vector<1x64xf32>
    %5 = vector.broadcast %4 : vector<1x64xf32> to vector<8x64xf32>
    %6 = arith.addf %3, %5 : vector<8x64xf32>
    %cst_5 = arith.constant 0.000000e+00 : f32
    %7 = vector.broadcast %cst_5 : f32 to vector<8x64xf32>
    %8 = arith.maximumf %6, %7 : vector<8x64xf32>
    %9 = arith.truncf %8 : vector<8x64xf32> to vector<8x64xbf16>
    %c0_6 = arith.constant 0 : index
    %c0_7 = arith.constant 0 : index
    %10 = vector.load %arg4[%c0_6, %c0_7] : memref<64x64xbf16, #tpu.memory_space<vmem>>, vector<64x64xbf16>
    %cst_8 = arith.constant dense<0.000000e+00> : vector<8x64xf32>
    %11 = tpu.matmul %9, %10, %cst_8 {dimension_numbers = #tpu.dot_dimension_numbers<[1], [0], [0], [1], [0, 0, 1, 1], [], []>} : vector<8x64xbf16>, vector<64x64xbf16>, vector<8x64xf32> -> vector<8x64xf32>
    %c0_9 = arith.constant 0 : index
    %c0_10 = arith.constant 0 : index
    %12 = vector.load %arg5[%c0_9, %c0_10] : memref<1x64xf32, #tpu.memory_space<vmem>>, vector<1x64xf32>
    %13 = vector.broadcast %12 : vector<1x64xf32> to vector<8x64xf32>
    %14 = arith.addf %11, %13 : vector<8x64xf32>
    %cst_11 = arith.constant 0.000000e+00 : f32
    %15 = vector.broadcast %cst_11 : f32 to vector<8x64xf32>
    %16 = arith.maximumf %14, %15 : vector<8x64xf32>
    %17 = arith.truncf %16 : vector<8x64xf32> to vector<8x64xbf16>
    %c0_12 = arith.constant 0 : index
    %c0_13 = arith.constant 0 : index
    %18 = vector.load %arg6[%c0_12, %c0_13] : memref<64x4xbf16, #tpu.memory_space<vmem>>, vector<64x4xbf16>
    %cst_14 = arith.constant dense<0.000000e+00> : vector<8x4xf32>
    %19 = tpu.matmul %17, %18, %cst_14 {dimension_numbers = #tpu.dot_dimension_numbers<[1], [0], [0], [1], [0, 0, 1, 1], [], []>} : vector<8x64xbf16>, vector<64x4xbf16>, vector<8x4xf32> -> vector<8x4xf32>
    %c0_15 = arith.constant 0 : index
    %c0_16 = arith.constant 0 : index
    %20 = vector.load %arg7[%c0_15, %c0_16] : memref<1x4xf32, #tpu.memory_space<vmem>>, vector<1x4xf32>
    %21 = vector.broadcast %20 : vector<1x4xf32> to vector<8x4xf32>
    %22 = arith.addf %19, %21 : vector<8x4xf32>
    %c0_17 = arith.constant 0 : index
    %c0_18 = arith.constant 0 : index
    %23 = vector.load %arg8[%c0_17, %c0_18] : memref<8x4xf32, #tpu.memory_space<vmem>>, vector<8x4xf32>
    tpu.vector_store %arg8[%c0_17, %c0_18], %22 {strides = array<i32>} : memref<8x4xf32, #tpu.memory_space<vmem>>, vector<8x4xf32>,
    return
  }
  func.func @transform_0(%arg0: i32) -> (i32, i32) {
    %c0_i32 = arith.constant 0 : i32
    %c0_i32_0 = arith.constant 0 : i32
    return %arg0, %c0_i32 : i32, i32
  }
  func.func @transform_1(%arg0: i32) -> (i32, i32) {
    %c0_i32 = arith.constant 0 : i32
    %c0_i32_0 = arith.constant 0 : i32
    %c0_i32_1 = arith.constant 0 : i32
    return %c0_i32, %c0_i32_0 : i32, i32
  }
  func.func @transform_2(%arg0: i32) -> (i32, i32) {
    %c0_i32 = arith.constant 0 : i32
    %c0_i32_0 = arith.constant 0 : i32
    %c0_i32_1 = arith.constant 0 : i32
    return %c0_i32, %c0_i32_0 : i32, i32
  }
  func.func @transform_3(%arg0: i32) -> (i32, i32) {
    %c0_i32 = arith.constant 0 : i32
    %c0_i32_0 = arith.constant 0 : i32
    %c0_i32_1 = arith.constant 0 : i32
    return %c0_i32, %c0_i32_0 : i32, i32
  }
  func.func @transform_4(%arg0: i32) -> (i32, i32) {
    %c0_i32 = arith.constant 0 : i32
    %c0_i32_0 = arith.constant 0 : i32
    %c0_i32_1 = arith.constant 0 : i32
    return %c0_i32, %c0_i32_0 : i32, i32
  }
  func.func @transform_5(%arg0: i32) -> (i32, i32) {
    %c0_i32 = arith.constant 0 : i32
    %c0_i32_0 = arith.constant 0 : i32
    %c0_i32_1 = arith.constant 0 : i32
    return %c0_i32, %c0_i32_0 : i32, i32
  }
  func.func @transform_6(%arg0: i32) -> (i32, i32) {
    %c0_i32 = arith.constant 0 : i32
    %c0_i32_0 = arith.constant 0 : i32
    %c0_i32_1 = arith.constant 0 : i32
    return %c0_i32, %c0_i32_0 : i32, i32
  }
  func.func @transform_7(%arg0: i32) -> (i32, i32) {
    %c0_i32 = arith.constant 0 : i32
    %c0_i32_0 = arith.constant 0 : i32
    return %arg0, %c0_i32 : i32, i32
  }
}

</mosaic_0001>

<llo_original>
// kernel: tpu_custom_call.1
$region0: #{tpu_custom_call.1}
  #allocation0 [shape = 'u32[]', space=smem, size = 0x4, offset = 0x4, fixed_abs, tag = 'smem constant byte address 0x4 - core index']
  #allocation1 [shape = 'u32[144,128]{1,0:T(1,128)}', space=vmem, size = 0x12000, scoped, tag = 'internal scratch']
  %s0 = inlined_call_operand.vmem [shape: f32[8,8], index: 0, kind: input, shape index: {}]
  %s1 = inlined_call_operand.vmem [shape: bf16[8,64], index: 1, kind: input, shape index: {}]
  %s2 = inlined_call_operand.vmem [shape: f32[1,64], index: 2, kind: input, shape index: {}]
  %s3 = inlined_call_operand.vmem [shape: bf16[64,64], index: 3, kind: input, shape index: {}]
  %s4 = inlined_call_operand.vmem [shape: f32[1,64], index: 4, kind: input, shape index: {}]
  %s5 = inlined_call_operand.vmem [shape: bf16[64,4], index: 5, kind: input, shape index: {}]
  %s6 = inlined_call_operand.vmem [shape: f32[1,4], index: 6, kind: input, shape index: {}]
  %s7 = inlined_call_operand.vmem [shape: f32[8,4], index: 7, kind: output, shape index: {}]
  %s8 = sld [smem:[#allocation0]]
  $region38: #{tpu_custom_call.1} parent=0
    _
  %s10 = ssub.s32 1, %s8
  %s11 = scalar_select 0, %s10, %s8
  // Predicated region
  $region2: #{tpu_custom_call.1} parent=0 // pred_check
    _
  $region3: #{tpu_custom_call.1} parent=0 // pred_check_branch
    %13 = sbr.rel (0) target = $region5
  $region4: #{tpu_custom_call.1} parent=0 // pred_region
    _
  $region5: #{tpu_custom_call.1} parent=0 // pred_fallthru
    _
  // Predicated region
  $region6: #{tpu_custom_call.1} parent=0 // pred_check
    _
  $region7: #{tpu_custom_call.1} parent=0 // pred_check_branch
    %15 = sbr.rel (0) target = $region9
  $region8: #{tpu_custom_call.1} parent=0 // pred_region
    _
  $region9: #{tpu_custom_call.1} parent=0 // pred_fallthru
    _
  // Predicated region
  $region10: #{tpu_custom_call.1} parent=0 // pred_check
    _
  $region11: #{tpu_custom_call.1} parent=0 // pred_check_branch
    %17 = sbr.rel (0) target = $region13
  $region12: #{tpu_custom_call.1} parent=0 // pred_region
    _
  $region13: #{tpu_custom_call.1} parent=0 // pred_fallthru
    _
  // Predicated region
  $region14: #{tpu_custom_call.1} parent=0 // pred_check
    _
  $region15: #{tpu_custom_call.1} parent=0 // pred_check_branch
    %19 = sbr.rel (0) target = $region17
  $region16: #{tpu_custom_call.1} parent=0 // pred_region
    _
  $region17: #{tpu_custom_call.1} parent=0 // pred_fallthru
    _
  // Predicated region
  $region18: #{tpu_custom_call.1} parent=0 // pred_check
    _
  $region19: #{tpu_custom_call.1} parent=0 // pred_check_branch
    %21 = sbr.rel (0) target = $region21
  $region20: #{tpu_custom_call.1} parent=0 // pred_region
    _
  $region21: #{tpu_custom_call.1} parent=0 // pred_fallthru
    _
  // Predicated region
  $region22: #{tpu_custom_call.1} parent=0 // pred_check
    _
  $region23: #{tpu_custom_call.1} parent=0 // pred_check_branch
    %23 = sbr.rel (0) target = $region25
  $region24: #{tpu_custom_call.1} parent=0 // pred_region
    _
  $region25: #{tpu_custom_call.1} parent=0 // pred_fallthru
    _
  // Predicated region
  $region26: #{tpu_custom_call.1} parent=0 // pred_check
    _
  $region27: #{tpu_custom_call.1} parent=0 // pred_check_branch
    %25 = sbr.rel (0) target = $region29
  $region28: #{tpu_custom_call.1} parent=0 // pred_region
    _
  $region29: #{tpu_custom_call.1} parent=0 // pred_fallthru
    _
  %v27 = vld [vmem:[%s0] sm:$0xff]
  %v28 = vpack.c.bf16 %v27, %v27
  %v29 = vld [vmem:[%s1] sm:$0xf]
  %v30 = vld [vmem:[%s2] sm:$0x1]
  %v32 = vlaneseq
  %v33 = vshrl.u32 %v32, 7
  %v34 = vsub.s32 0, %v33
  %v35 = vrot.slane %v30, %v34
  %vm37 = vcmask 64512
  %v39 = vsel %vm37, %v28, 0
  %vm41 = vcmask 1043456
  %v43 = vsel %vm41, %v29, 0
  %45 = vmatprep.subr.bf16.mxu0 0
  %46 = vmatpush1.bf16.msra.mxu0 %v43
  %47 = vmatprep.subr.bf16.mxu0 0
  %48 = vmatpush1.bf16.msra.mxu0 0
  %49 = vmatprep.subr.bf16.mxu0 0
  %50 = vmatpush1.bf16.msra.mxu0 0
  %51 = vmatprep.subr.bf16.mxu0 0
  %52 = vmatpush1.bf16.msra.mxu0 0
  %53 = vmatprep.subr.bf16.mxu0 0
  %54 = vmatpush1.bf16.msra.mxu0 0
  %55 = vmatprep.subr.bf16.mxu0 0
  %56 = vmatpush1.bf16.msra.mxu0 0
  %57 = vmatprep.subr.bf16.mxu0 0
  %58 = vmatpush1.bf16.msra.mxu0 0
  %59 = vmatprep.subr.bf16.mxu0 0
  %60 = vmatpush1.bf16.msra.mxu0 0
  %61 = vmatprep.subr.bf16.mxu0 0
  %62 = vmatpush1.bf16.msra.mxu0 0
  %63 = vmatprep.subr.bf16.mxu0 0
  %64 = vmatpush1.bf16.msra.mxu0 0
  %65 = vmatprep.subr.bf16.mxu0 0
  %66 = vmatpush1.bf16.msra.mxu0 0
  %67 = vmatprep.subr.bf16.mxu0 0
  %68 = vmatpush1.bf16.msra.mxu0 0
  %69 = vmatprep.subr.bf16.mxu0 0
  %70 = vmatpush1.bf16.msra.mxu0 0
  %71 = vmatprep.subr.bf16.mxu0 0
  %72 = vmatpush1.bf16.msra.mxu0 0
  %73 = vmatprep.subr.bf16.mxu0 0
  %74 = vmatpush1.bf16.msra.mxu0 0
  %75 = vmatprep.subr.bf16.mxu0 0
  %76 = vmatpush1.bf16.msra.mxu0 0
  %77 = vmatprep.mubr.bf16.mxu0 0
  %78 = vmatmul.mubr.bf16.gmra.mrb[0].mxu0 %v39
  %v79 = vpop.f32.mrb[0].mxu0
  %v80 = vadd.f32 %v35, %v79
  %v81 = vpop.f32.mrb[0].mxu0
  %v82 = vpop.f32.mrb[0].mxu0
  %v83 = vpop.f32.mrb[0].mxu0
  %84 = vdwg.mxu0
  %v85 = vmax.f32 %v80, 0.0
  %v86 = vpack.c.bf16 %v85, %v85
  %v87 = vld [vmem:[%s3] sm:$0xf]
  %v88 = vld [vmem:[%s3 + $0x4] sm:$0xf]
  %v89 = vld [vmem:[%s3 + $0x8] sm:$0xf]
  %v90 = vld [vmem:[%s3 + $0xc] sm:$0xf]
  %v91 = vld [vmem:[%s3 + $0x10] sm:$0xf]
  %v92 = vld [vmem:[%s3 + $0x14] sm:$0xf]
  %v93 = vld [vmem:[%s3 + $0x18] sm:$0xf]
  %v94 = vld [vmem:[%s3 + $0x1c] sm:$0xf]
  %v95 = vld [vmem:[%s4] sm:$0x1]
  %v97 = vlaneseq
  %v98 = vshrl.u32 %v97, 7
  %v99 = vsub.s32 0, %v98
  %v100 = vrot.slane %v95, %v99
  %v110 = vunpack.c.l.b16 %v87
  %v111 = vunpack.c.l.b16 %v88
  %v112 = vunpack.c.l.b16 %v89
  %v113 = vunpack.c.l.b16 %v90
  %v114 = vunpack.c.l.b16 %v91
  %v115 = vunpack.c.l.b16 %v92
  %v116 = vunpack.c.l.b16 %v93
  %v117 = vunpack.c.l.b16 %v94
  %v118 = vpack.c.b16 %v111, %v110
  %v119 = vpack.c.b16 %v113, %v112
  %v120 = vpack.c.b16 %v115, %v114
  %v121 = vpack.c.b16 %v117, %v116
  %vm126 = vcmask 523264
  %v128 = vsel %vm126, %v86, 0
  %130 = vmatprep.subr.bf16.mxu0 0
  %131 = vmatpush1.bf16.msra.mxu0 %v118
  %132 = vmatprep.subr.bf16.mxu0 0
  %133 = vmatpush1.bf16.msra.mxu0 %v119
  %134 = vmatprep.subr.bf16.mxu0 0
  %135 = vmatpush1.bf16.msra.mxu0 %v120
  %136 = vmatprep.subr.bf16.mxu0 0
  %137 = vmatpush1.bf16.msra.mxu0 %v121
  %138 = vmatprep.subr.bf16.mxu0 0
  %139 = vmatpush1.bf16.msra.mxu0 0
  %140 = vmatprep.subr.bf16.mxu0 0
  %141 = vmatpush1.bf16.msra.mxu0 0
  %142 = vmatprep.subr.bf16.mxu0 0
  %143 = vmatpush1.bf16.msra.mxu0 0
  %144 = vmatprep.subr.bf16.mxu0 0
  %145 = vmatpush1.bf16.msra.mxu0 0
  %146 = vmatprep.subr.bf16.mxu0 0
  %147 = vmatpush1.bf16.msra.mxu0 0
  %148 = vmatprep.subr.bf16.mxu0 0
  %149 = vmatpush1.bf16.msra.mxu0 0
  %150 = vmatprep.subr.bf16.mxu0 0
  %151 = vmatpush1.bf16.msra.mxu0 0
  %152 = vmatprep.subr.bf16.mxu0 0
  %153 = vmatpush1.bf16.msra.mxu0 0
  %154 = vmatprep.subr.bf16.mxu0 0
  %155 = vmatpush1.bf16.msra.mxu0 0
  %156 = vmatprep.subr.bf16.mxu0 0
  %157 = vmatpush1.bf16.msra.mxu0 0
  %158 = vmatprep.subr.bf16.mxu0 0
  %159 = vmatpush1.bf16.msra.mxu0 0
  %160 = vmatprep.subr.bf16.mxu0 0
  %161 = vmatpush1.bf16.msra.mxu0 0
  %162 = vmatprep.mubr.bf16.mxu0 0
  %163 = vmatmul.mubr.bf16.gmra.mrb[0].mxu0 %v128
  %v164 = vpop.f32.mrb[0].mxu0
  %v165 = vadd.f32 %v100, %v164
  %v166 = vpop.f32.mrb[0].mxu0
  %v167 = vpop.f32.mrb[0].mxu0
  %v168 = vpop.f32.mrb[0].mxu0
  %169 = vdwg.mxu0
  %v170 = vmax.f32 %v165, 0.0
  %v171 = vpack.c.bf16 %v170, %v170
  %v172 = vld [vmem:[%s5] sm:$0xf]
  %v173 = vld [vmem:[%s5 + $0x4] sm:$0xf]
  %v174 = vld [vmem:[%s5 + $0x8] sm:$0xf]
  %v175 = vld [vmem:[%s5 + $0xc] sm:$0xf]
  %v176 = vld [vmem:[%s5 + $0x10] sm:$0xf]
  %v177 = vld [vmem:[%s5 + $0x14] sm:$0xf]
  %v178 = vld [vmem:[%s5 + $0x18] sm:$0xf]
  %v179 = vld [vmem:[%s5 + $0x1c] sm:$0xf]
  %v180 = vld [vmem:[%s6] sm:$0x1]
  %v182 = vlaneseq
  %v183 = vshrl.u32 %v182, 7
  %v184 = vsub.s32 0, %v183
  %v185 = vrot.slane %v180, %v184
  %v195 = vunpack.c.l.b16 %v172
  %v196 = vunpack.c.l.b16 %v173
  %v197 = vunpack.c.l.b16 %v174
  %v198 = vunpack.c.l.b16 %v175
  %v199 = vunpack.c.l.b16 %v176
  %v200 = vunpack.c.l.b16 %v177
  %v201 = vunpack.c.l.b16 %v178
  %v202 = vunpack.c.l.b16 %v179
  %v203 = vpack.c.b16 %v196, %v195
  %v204 = vpack.c.b16 %v198, %v197
  %v205 = vpack.c.b16 %v200, %v199
  %v206 = vpack.c.b16 %v202, %v201
  %v212 = vsel %vm126, %v171, 0
  %214 = vmatprep.subr.bf16.mxu0 0
  %215 = vmatpush1.bf16.msra.mxu0 %v203
  %216 = vmatprep.subr.bf16.mxu0 0
  %217 = vmatpush1.bf16.msra.mxu0 %v204
  %218 = vmatprep.subr.bf16.mxu0 0
  %219 = vmatpush1.bf16.msra.mxu0 %v205
  %220 = vmatprep.subr.bf16.mxu0 0
  %221 = vmatpush1.bf16.msra.mxu0 %v206
  %222 = vmatprep.subr.bf16.mxu0 0
  %223 = vmatpush1.bf16.msra.mxu0 0
  %224 = vmatprep.subr.bf16.mxu0 0
  %225 = vmatpush1.bf16.msra.mxu0 0
  %226 = vmatprep.subr.bf16.mxu0 0
  %227 = vmatpush1.bf16.msra.mxu0 0
  %228 = vmatprep.subr.bf16.mxu0 0
  %229 = vmatpush1.bf16.msra.mxu0 0
  %230 = vmatprep.subr.bf16.mxu0 0
  %231 = vmatpush1.bf16.msra.mxu0 0
  %232 = vmatprep.subr.bf16.mxu0 0
  %233 = vmatpush1.bf16.msra.mxu0 0
  %234 = vmatprep.subr.bf16.mxu0 0
  %235 = vmatpush1.bf16.msra.mxu0 0
  %236 = vmatprep.subr.bf16.mxu0 0
  %237 = vmatpush1.bf16.msra.mxu0 0
  %238 = vmatprep.subr.bf16.mxu0 0
  %239 = vmatpush1.bf16.msra.mxu0 0
  %240 = vmatprep.subr.bf16.mxu0 0
  %241 = vmatpush1.bf16.msra.mxu0 0
  %242 = vmatprep.subr.bf16.mxu0 0
  %243 = vmatpush1.bf16.msra.mxu0 0
  %244 = vmatprep.subr.bf16.mxu0 0
  %245 = vmatpush1.bf16.msra.mxu0 0
  %246 = vmatprep.mubr.bf16.mxu0 0
  %247 = vmatmul.mubr.bf16.gmra.mrb[0].mxu0 %v212
  %v248 = vpop.f32.mrb[0].mxu0
  %v249 = vadd.f32 %v185, %v248
  %v250 = vpop.f32.mrb[0].mxu0
  %v251 = vpop.f32.mrb[0].mxu0
  %v252 = vpop.f32.mrb[0].mxu0
  %253 = vdwg.mxu0
  %vm254 = vcmask 31744
  %255 = vst.msk [vmem:[%s7] sm:$0xff] %vm254, %v249
  // Predicated region
  $region30: #{tpu_custom_call.1} parent=0 // pred_check
    _
  $region31: #{tpu_custom_call.1} parent=0 // pred_check_branch
    %257 = sbr.rel (0) target = $region33
  $region32: #{tpu_custom_call.1} parent=0 // pred_region
    _
  $region33: #{tpu_custom_call.1} parent=0 // pred_fallthru
    _
  // Predicated region
  $region34: #{tpu_custom_call.1} parent=0 // pred_check
    _
  $region35: #{tpu_custom_call.1} parent=0 // pred_check_branch
    %259 = sbr.rel (0) target = $region37
  $region36: #{tpu_custom_call.1} parent=0 // pred_region
    _
  $region37: #{tpu_custom_call.1} parent=0 // pred_fallthru
    _

</llo_original>
